<compile_context>
chip_gen: v7x
topology: tpu7x:2x2x1
jax: 0.10.0
libtpu: 0.0.40
codegen_flags: <defaults>
</compile_context>

<pallas_src>
import jax
import jax.numpy as jnp
from jax.experimental import pallas as pl
from jax.experimental.pallas import tpu as pltpu

_LANE = 128


def _round_up(x, mult):
    return ((x + mult - 1) // mult) * mult


def _chip_budgets():
    """Generation-aware (vmem_limit_bytes, per-block double-buffered byte target)."""
    vmem_cap = 64 * 1024 * 1024              # conservative default (v7x per-TC VMEM)
    try:
        vmem_cap = int(pltpu.get_tpu_info().vmem_capacity_bytes)
    except Exception:
        pass                                 # CPU / interpret mode or older jax
    vmem_limit = min(vmem_cap // 2, 48 * 1024 * 1024)
    # Target ~1/4 of the scoped limit for the double-buffered working set so the
    # compiler keeps ample headroom for internal scratch / spills.
    target = max(4 * 1024 * 1024, vmem_limit // 4)
    return vmem_limit, target


def _choose_tile(m, n_rows, n_streams, itemsize, target_bytes):
    """Largest lane tile (multiple of 128) whose double-buffered working set
    (n_streams arrays x 2 buffers x n_rows x tm x itemsize) stays under
    target_bytes.  Keeps >= 2 lane-blocks when m allows so both v7x
    TensorCores get work.  For m < 128 a single full-array block is used
    (the allowed exception to the (8,128) rule) — no padding anywhere."""
    if m <= _LANE:
        return m
    m_ceil = _round_up(m, _LANE)
    per_lane = n_streams * 2 * max(n_rows, 8) * itemsize
    tm = max(_LANE, (target_bytes // per_lane) // _LANE * _LANE)
    if tm >= m_ceil:
        # Whole array fits in one block: split once so the grid length is >= 2
        # (megacore sharding on v7x; measured-neutral on v5e/v6e).
        tm = _round_up(pl.cdiv(m_ceil, 2), _LANE) if m_ceil >= 2 * _LANE else m_ceil
    return min(tm, m_ceil)


# ---------------------------------------------------------------------------
# Kernel 1: forward (rv=True):  x = center + noise * var
# ---------------------------------------------------------------------------
def _peds_forward_kernel(var_ref, center_ref, noise_ref, x_ref):
    c = center_ref[...].astype(jnp.float32)          # (1, tm)
    n = noise_ref[...].astype(jnp.float32)           # (N, tm)
    # Implicit (1, tm) -> (N, tm) broadcast; cast only at the final store.
    x_ref[...] = (c + n * var_ref[0]).astype(x_ref.dtype)


def peds_forward(center, var, key, N, out_dtype=None):
    """rv=True forward: x = center + randn(N, m) * var.

    Pass out_dtype=jnp.bfloat16 to halve the HBM write stream (useful on v5e)
    if downstream math tolerates it; the cast happens only at the store.
    """
    m = center.shape[-1]
    out_dtype = center.dtype if out_dtype is None else out_dtype
    vmem_limit, target = _chip_budgets()
    tm = _choose_tile(m, N, n_streams=2, itemsize=4, target_bytes=target)
    grid = (pl.cdiv(m, tm),)

    # TODO(synk): on-chip noise (pltpu.prng_seed / stateful_normal) has no
    # CPU/interpret lowering and is EUP-heavy on v7x; noise is generated in
    # the wrapper and only the affine transform is fused in the kernel.
    noise = jax.random.normal(key, (N, m), dtype=jnp.float32)
    var_arr = jnp.reshape(jnp.asarray(var, dtype=jnp.float32), (1,))
    center2d = center.reshape(1, m)

    return pl.pallas_call(
        _peds_forward_kernel,
        out_shape=jax.ShapeDtypeStruct((N, m), out_dtype),
        grid=grid,
        in_specs=[
            pl.BlockSpec(memory_space=pltpu.MemorySpace.SMEM),   # var   (1,) f32
            pl.BlockSpec((1, tm), lambda j: (0, j)),             # center lane tile
            pl.BlockSpec((N, tm), lambda j: (0, j)),             # noise tile
        ],
        out_specs=pl.BlockSpec((N, tm), lambda j: (0, j)),
        compiler_params=pltpu.CompilerParams(
            dimension_semantics=("parallel",),
            vmem_limit_bytes=vmem_limit,
        ),
    )(var_arr, center2d, noise)


# ---------------------------------------------------------------------------
# Kernel 2: peds_step gradient projection (rv=False, independent=False):
#     new_grad = mean(grad, 0) + alpha * (x - mean(x, 0))
# ---------------------------------------------------------------------------
def _peds_step_kernel(alpha_ref, x_ref, grad_ref, out_ref):
    x = x_ref[...].astype(jnp.float32)
    g = grad_ref[...].astype(jnp.float32)
    g_mean = jnp.mean(g, axis=0, keepdims=True)      # (1, tm) — N axis is block-local
    x_mean = jnp.mean(x, axis=0, keepdims=True)
    # Implicit (1, tm) -> (N, tm) broadcast; no materialized broadcast_to temp.
    out_ref[...] = (g_mean + alpha_ref[0] * (x - x_mean)).astype(out_ref.dtype)


def peds_step_grad(x, grad, alpha, donate_grad=False):
    """rv=False, independent=False: new_grad = mean(grad,0) + alpha*(x - mean(x,0)).

    Set donate_grad=True in production to alias grad -> out (no fresh (N, m)
    HBM allocation); kept False here because the demo re-reads the original grad.
    """
    N, m = x.shape
    vmem_limit, target = _chip_budgets()
    tm = _choose_tile(m, N, n_streams=3, itemsize=4, target_bytes=target)
    grid = (pl.cdiv(m, tm),)
    alpha_arr = jnp.reshape(jnp.asarray(alpha, dtype=jnp.float32), (1,))

    return pl.pallas_call(
        _peds_step_kernel,
        out_shape=jax.ShapeDtypeStruct((N, m), grad.dtype),
        grid=grid,
        in_specs=[
            pl.BlockSpec(memory_space=pltpu.MemorySpace.SMEM),   # alpha (1,) f32
            pl.BlockSpec((N, tm), lambda j: (0, j)),             # x tile
            pl.BlockSpec((N, tm), lambda j: (0, j)),             # grad tile
        ],
        out_specs=pl.BlockSpec((N, tm), lambda j: (0, j)),
        input_output_aliases={2: 0} if donate_grad else {},
        compiler_params=pltpu.CompilerParams(
            dimension_semantics=("parallel",),
            vmem_limit_bytes=vmem_limit,
        ),
    )(alpha_arr, x, grad)


# ---------------------------------------------------------------------------
# Deterministic parameter construction mirroring PEDS_Model.__init__
# ---------------------------------------------------------------------------
def init_peds_params(key, N, m, upper, lower, init_noise, rv):
    k1, k2 = jax.random.split(key)
    center = lower + jax.random.uniform(k1, (m,), dtype=jnp.float32) * (upper - lower)
    if rv:
        return {"center": center, "var": jnp.float32(init_noise)}
    x = center[None, :] + jax.random.normal(k2, (N, m), dtype=jnp.float32) * init_noise
    return {"x": x}


if __name__ == "__main__":
    # Small shapes implied by the module: N ensemble copies of an m-dim parameter.
    # m = 384 is NOT a multiple of the chosen 256-lane tile -> exercises the
    # masked partial last block (no wrapper pad / slice).
    N, m = 8, 384
    alpha = 1.0
    init_noise = 0.1
    upper, lower = 1.0, -1.0

    key = jax.random.PRNGKey(0)
    k_params, k_noise, k_grad = jax.random.split(key, 3)

    # ---- rv=True forward: x = center + randn(N, m) * var ---------------------
    params_rv = init_peds_params(k_params, N, m, upper, lower, init_noise, rv=True)
    center, var = params_rv["center"], params_rv["var"]

    x_out = jax.block_until_ready(peds_forward(center, var, k_noise, N))
    assert x_out.shape == (N, m) and x_out.dtype == jnp.float32
    ref_x = center[None, :] + jax.random.normal(k_noise, (N, m), dtype=jnp.float32) * var
    assert jnp.allclose(x_out, ref_x, atol=1e-6, rtol=1e-6)
    assert bool(jnp.all(jnp.isfinite(x_out)))

    # ---- rv=False forward is a no-op (x IS the learned Parameter) ------------
    params_sgd = init_peds_params(k_params, N, m, upper, lower, init_noise, rv=False)
    x_param = params_sgd["x"]
    # TODO(synk): rv=False forward() does nothing in the abstract base class;
    #             there is nothing to lower for that branch.

    # ---- peds_step gradient projection kernel (exact reference) --------------
    grad = jax.random.normal(k_grad, (N, m), dtype=jnp.float32)
    new_grad = jax.block_until_ready(peds_step_grad(x_param, grad, alpha))
    ref_grad = (jnp.mean(grad, axis=0, keepdims=True)
                + alpha * (x_param - jnp.mean(x_param, axis=0, keepdims=True)))
    assert jnp.allclose(new_grad, ref_grad, atol=1e-5, rtol=1e-5)

    # Small-m path: m = 32 (< lane width) uses a single full-array block, no padding.
    x_s, g_s = x_param[:, :32], grad[:, :32]
    new_grad_s = jax.block_until_ready(peds_step_grad(x_s, g_s, alpha))
    ref_s = (jnp.mean(g_s, axis=0, keepdims=True)
             + alpha * (x_s - jnp.mean(x_s, axis=0, keepdims=True)))
    assert jnp.allclose(new_grad_s, ref_s, atol=1e-5, rtol=1e-5)

    print("KERNEL_OK")
</pallas_src>

<mosaic_0001>
module attributes {stable_mosaic.version = 11 : i64} {
  func.func @_peds_forward_kernel(%arg0: i32, %arg1: memref<1xf32, #tpu.memory_space<smem>>, %arg2: memref<1x256xf32, #tpu.memory_space<vmem>>, %arg3: memref<8x256xf32, #tpu.memory_space<vmem>>, %arg4: memref<8x256xf32, #tpu.memory_space<vmem>>) attributes {dimension_semantics = [#tpu.dimension_semantics<parallel>], iteration_bounds = array<i64: 2>, scalar_prefetch = 0 : i64, scratch_operands = 0 : i64, tpu.core_type = #tpu.core_type<tc>, window_params = [{transform_indices = @transform_0, window_bounds = array<i64: 1>}, {transform_indices = @transform_1, window_bounds = array<i64: 1, 256>}, {transform_indices = @transform_2, window_bounds = array<i64: 8, 256>}, {transform_indices = @transform_3, window_bounds = array<i64: 8, 256>}]} {
    %c0 = arith.constant 0 : index
    %c0_0 = arith.constant 0 : index
    %0 = vector.load %arg2[%c0, %c0_0] : memref<1x256xf32, #tpu.memory_space<vmem>>, vector<1x256xf32>
    %c0_1 = arith.constant 0 : index
    %c0_2 = arith.constant 0 : index
    %1 = vector.load %arg3[%c0_1, %c0_2] : memref<8x256xf32, #tpu.memory_space<vmem>>, vector<8x256xf32>
    %c0_3 = arith.constant 0 : index
    %2 = memref.load %arg1[%c0_3] : memref<1xf32, #tpu.memory_space<smem>>
    %3 = vector.broadcast %2 : f32 to vector<8x256xf32>
    %4 = arith.mulf %1, %3 : vector<8x256xf32>
    %5 = vector.broadcast %0 : vector<1x256xf32> to vector<8x256xf32>
    %6 = arith.addf %5, %4 : vector<8x256xf32>
    %c0_4 = arith.constant 0 : index
    %c0_5 = arith.constant 0 : index
    %7 = vector.load %arg4[%c0_4, %c0_5] : memref<8x256xf32, #tpu.memory_space<vmem>>, vector<8x256xf32>
    tpu.vector_store %arg4[%c0_4, %c0_5], %6 {strides = array<i32>} : memref<8x256xf32, #tpu.memory_space<vmem>>, vector<8x256xf32>,
    return
  }
  func.func @transform_0(%arg0: i32) -> i32 {
    %c0_i32 = arith.constant 0 : i32
    %c0_i32_0 = arith.constant 0 : i32
    return %c0_i32 : i32
  }
  func.func @transform_1(%arg0: i32) -> (i32, i32) {
    %c0_i32 = arith.constant 0 : i32
    %c0_i32_0 = arith.constant 0 : i32
    return %c0_i32, %arg0 : i32, i32
  }
  func.func @transform_2(%arg0: i32) -> (i32, i32) {
    %c0_i32 = arith.constant 0 : i32
    %c0_i32_0 = arith.constant 0 : i32
    return %c0_i32, %arg0 : i32, i32
  }
  func.func @transform_3(%arg0: i32) -> (i32, i32) {
    %c0_i32 = arith.constant 0 : i32
    %c0_i32_0 = arith.constant 0 : i32
    return %c0_i32, %arg0 : i32, i32
  }
}

</mosaic_0001>

<llo_original>
// kernel: tpu_custom_call.1
$region0: #{tpu_custom_call.1}
  #allocation0 [shape = 'u32[]', space=smem, size = 0x4, offset = 0x4, fixed_abs, tag = 'smem constant byte address 0x4 - core index']
  #allocation1 [shape = 'u32[144,128]{1,0:T(1,128)}', space=vmem, size = 0x12000, scoped, tag = 'internal scratch']
  #allocation2 [shape = 'f32[1]{0:T(128)S(6)}', space=smem, size = 0x200, scoped, tag = 'scoped memory for tpu_custom_call.1']
  %s0 = inlined_call_operand.<no memory space> [shape: f32[1], index: 0, kind: input, shape index: {}]
  %s1 = inlined_call_operand.vmem [shape: f32[1,384], index: 1, kind: input, shape index: {}]
  %s2 = inlined_call_operand.hbm [shape: f32[8,384], index: 2, kind: input, shape index: {}]
  %s3 = inlined_call_operand.hbm [shape: f32[8,384], index: 3, kind: output, shape index: {}]
  %s4 = sld [smem:[#allocation0]]
  $region49: #{tpu_custom_call.1} parent=0
    _
  %s6 = ssub.s32 1, %s4
  %s7 = scalar_select 0, %s6, %s4
  %8 = sst [smem:[#allocation2]] %s0
  $region1: #{tpu_custom_call.1} parent=0
    #allocation3 [shape = 'u8[16384]{0}', space=vmem, size = 0x4000, scoped, tag = 'input window, operand 2']
    #allocation4 [shape = 's32[2]{0}', space=sflag, size = 0x8, scoped, tag = 'scoped memory for tpu_custom_call.1']
    #allocation5 [shape = 's32[2]{0}', space=sflag, size = 0x8, scoped, tag = 'scoped memory for tpu_custom_call.1']
    #allocation6 [shape = 'u8[16384]{0}', space=vmem, size = 0x4000, scoped, tag = 'output window, operand 0']
    %9 = vsyncpa [#allocation4], 0
    %s10 = scalar_lea.sflag [#allocation4], 1
    %11 = vsyncpa %s10, 0
    %12 = vsyncpa [#allocation5], 0
    %s13 = scalar_lea.sflag [#allocation5], 1
    %14 = vsyncpa %s13, 0
    loop: start=0, step=1, limit=4
    $region2: #{tpu_custom_call.1} parent=1 // loop_pre_header
      _
    $region3: #{tpu_custom_call.1} parent=1 // loop_header
      %s16 = sphi 0, %s20
      %p17 = scmp.ge.s32.totalorder %s16, 4
      %s24 = sphi 0, %s24
      %s26 = sphi 0, %s24
      %s27 = sphi 0, %s26
      %s41 = sphi 0, %s27
      %s47 = sphi 0, %s49
      %s50 = sphi 0, %s47
      %s51 = sphi 0, %s50
      %s67 = sphi 0, %s51
      %s73 = sphi 0, %s75
      %s76 = sphi 0, %s73
      %s77 = sphi 0, %s76
      %s93 = sphi 0, %s77
      %s99 = sphi 0, %s101
      %s102 = sphi 0, %s99
      %s103 = sphi 0, %s102
      %s119 = sphi 0, %s103
    $region4: #{tpu_custom_call.1} parent=1 // loop_header_branch
      %19 = sbr.rel (%p17) target = $region8
    $region5: #{tpu_custom_call.1} parent=1 // loop_body
      %s21 = ssub.s32 %s16, 1
      %s22 = ssub.s32 %s16, 2
      %s23 = sadd.s32 %s16, 1
      %s25 = sadd.s32 %s24, 1
      %p28 = scmp.eq.s32.totalorder %s16, 1
      %p29 = scmp.ne.s32.totalorder %s24, %s26
      %p30 = scmp.eq.s32.totalorder %s16, 0
      %p31 = por %p29, %p30
      %p32 = scmp.ne.s32.totalorder %s24, %s26
      %p33 = scmp.eq.s32.totalorder %s21, 1
      %p34 = por %p32, %p33
      %p35 = scmp.ne.s32.totalorder %s26, %s27
      %p36 = scmp.eq.s32.totalorder %s21, 0
      %p37 = por %p35, %p36
      %p38 = scmp.ne.s32.totalorder %s26, %s27
      %p39 = scmp.eq.s32.totalorder %s22, 1
      %p40 = por %p38, %p39
      %p42 = scmp.ne.s32.totalorder %s27, %s41
      %p43 = scmp.eq.s32.totalorder %s22, 0
      %p44 = por %p42, %p43
      %s45 = ssub.s32 %s16, %s23
      %p46 = scmp.eq.s32.totalorder %s45, 0
      %s48 = sadd.s32 %s47, 1
      %s49 = scalar_select %p46, %s47, %s48
      %p52 = pneg %p46
      %p53 = scmp.eq.s32.totalorder %s16, 1
      %p54 = por %p52, %p53
      %p55 = scmp.ne.s32.totalorder %s47, %s50
      %p56 = scmp.eq.s32.totalorder %s16, 0
      %p57 = por %p55, %p56
      %p58 = scmp.ne.s32.totalorder %s47, %s50
      %p59 = scmp.eq.s32.totalorder %s21, 1
      %p60 = por %p58, %p59
      %p61 = scmp.ne.s32.totalorder %s50, %s51
      %p62 = scmp.eq.s32.totalorder %s21, 0
      %p63 = por %p61, %p62
      %p64 = scmp.ne.s32.totalorder %s50, %s51
      %p65 = scmp.eq.s32.totalorder %s22, 1
      %p66 = por %p64, %p65
      %p68 = scmp.ne.s32.totalorder %s51, %s67
      %p69 = scmp.eq.s32.totalorder %s22, 0
      %p70 = por %p68, %p69
      %s71 = ssub.s32 %s16, %s23
      %p72 = scmp.eq.s32.totalorder %s71, 0
      %s74 = sadd.s32 %s73, 1
      %s75 = scalar_select %p72, %s73, %s74
      %p78 = pneg %p72
      %p79 = scmp.eq.s32.totalorder %s16, 1
      %p80 = por %p78, %p79
      %p81 = scmp.ne.s32.totalorder %s73, %s76
      %p82 = scmp.eq.s32.totalorder %s16, 0
      %p83 = por %p81, %p82
      %p84 = scmp.ne.s32.totalorder %s73, %s76
      %p85 = scmp.eq.s32.totalorder %s21, 1
      %p86 = por %p84, %p85
      %p87 = scmp.ne.s32.totalorder %s76, %s77
      %p88 = scmp.eq.s32.totalorder %s21, 0
      %p89 = por %p87, %p88
      %p90 = scmp.ne.s32.totalorder %s76, %s77
      %p91 = scmp.eq.s32.totalorder %s22, 1
      %p92 = por %p90, %p91
      %p94 = scmp.ne.s32.totalorder %s77, %s93
      %p95 = scmp.eq.s32.totalorder %s22, 0
      %p96 = por %p94, %p95
      %s97 = ssub.s32 %s16, %s23
      %p98 = scmp.eq.s32.totalorder %s97, 0
      %s100 = sadd.s32 %s99, 1
      %s101 = scalar_select %p98, %s99, %s100
      %p104 = pneg %p98
      %p105 = scmp.eq.s32.totalorder %s16, 1
      %p106 = por %p104, %p105
      %p107 = scmp.ne.s32.totalorder %s99, %s102
      %p108 = scmp.eq.s32.totalorder %s16, 0
      %p109 = por %p107, %p108
      %p110 = scmp.ne.s32.totalorder %s99, %s102
      %p111 = scmp.eq.s32.totalorder %s21, 1
      %p112 = por %p110, %p111
      %p113 = scmp.ne.s32.totalorder %s102, %s103
      %p114 = scmp.eq.s32.totalorder %s21, 0
      %p115 = por %p113, %p114
      %p116 = scmp.ne.s32.totalorder %s102, %s103
      %p117 = scmp.eq.s32.totalorder %s22, 1
      %p118 = por %p116, %p117
      %p120 = scmp.ne.s32.totalorder %s103, %s119
      %p121 = scmp.eq.s32.totalorder %s22, 0
      %p122 = por %p120, %p121
      %p123 = scmp.le.s32.totalorder 1, %s16
      %p124 = scmp.lt.s32.totalorder %s16, 3
      %p125 = pnand %p123, %p124
      %p126 = pneg %p125
      // Predicated region
      $region9: #{tpu_custom_call.1} parent=5 // pred_check
        _
      $region10: #{tpu_custom_call.1} parent=5 // pred_check_branch
        %128 = sbr.rel (%p125) target = $region12
      $region11: #{tpu_custom_call.1} parent=5 // pred_region
        %s129 = ssub.s32 %s16, 1
        // Predicated region
        $region13: #{tpu_custom_call.1} parent=11 // pred_check
          %p130 = pneg %p37
        $region14: #{tpu_custom_call.1} parent=11 // pred_check_branch
          %132 = sbr.rel (%p130) target = $region16
        $region15: #{tpu_custom_call.1} parent=11 // pred_region
          _
        $region16: #{tpu_custom_call.1} parent=11 // pred_fallthru
          _
      $region12: #{tpu_custom_call.1} parent=5 // pred_fallthru
        _
      %p133 = scmp.lt.s32.totalorder %s16, 2
      // Predicated region
      $region17: #{tpu_custom_call.1} parent=5 // pred_check
        %p134 = pneg %p133
      $region18: #{tpu_custom_call.1} parent=5 // pred_check_branch
        %136 = sbr.rel (%p134) target = $region20
      $region19: #{tpu_custom_call.1} parent=5 // pred_region
        // Predicated region
        $region21: #{tpu_custom_call.1} parent=19 // pred_check
          %p137 = pneg %p57
        $region22: #{tpu_custom_call.1} parent=19 // pred_check_branch
          %139 = sbr.rel (%p137) target = $region24
        $region23: #{tpu_custom_call.1} parent=19 // pred_region
          %s140 = smul.u32 2, %s16
          %s141 = ssub.s32 3, %s140
          %p142 = scmp.lt.s32.totalorder %s141, 2
          %s143 = scalar_select %p142, %s141, 2
          %s144 = smul.u32 16, %s143
          %p145 = scmp.lt.s32.totalorder %s140, 2
          %s146 = scalar_select %p145, %s140, 2
          %s147 = scalar_lea.vmem %s1, %s146
          %s148 = smul.u32 2, %s16
          %s149 = ssub.s32 3, %s148
          %p150 = scmp.lt.s32.totalorder %s149, 2
          %s151 = scalar_select %p150, %s149, 2
          %s152 = smul.u32 16, %s151
        $region24: #{tpu_custom_call.1} parent=19 // pred_fallthru
          _
        // Predicated region
        $region25: #{tpu_custom_call.1} parent=19 // pred_check
          %p153 = pneg %p83
        $region26: #{tpu_custom_call.1} parent=19 // pred_check_branch
          %155 = sbr.rel (%p153) target = $region28
        $region27: #{tpu_custom_call.1} parent=19 // pred_region
          %s156 = sand.u32 %s73, 1
          %s157 = scalar_lea.sflag [#allocation4], %s156
          %s158 = sand.u32 %s73, 1
          %s159 = smul.addr %s158, 16
          %s160 = scalar_lea.vmem [#allocation3], %s159
          %s161 = smul.u32 2, %s16
          %s162 = ssub.s32 3, %s161
          %p163 = scmp.lt.s32.totalorder %s162, 2
          %s164 = scalar_select %p163, %s162, 2
          %s165 = smul.u32 128, %s164
          %s167 = ssub.s32 256, %s165
          %168 = vsyncadd %s157, %s167
          %p169 = scmp.ne.s32.totalorder 0, %s165
          %s170 = smul.addr %s161, 128
          %s171 = scalar_lea.hbm %s2, %s170
          %s172 = smul.u32 %s164, 8
          %s173 = sshll.u32 %s172, 4
          %s174 = sshll.u32 %s160, 4
          %s175 = int_to_ptr.vmem [resolvable:$true] %s174
          %177 = dma.hbm_to_vmem [thread:$0]  (%p169), %s171, %s173, %s175, %s157
        $region28: #{tpu_custom_call.1} parent=19 // pred_fallthru
          _
      $region20: #{tpu_custom_call.1} parent=5 // pred_fallthru
        _
      %p178 = scmp.le.s32.totalorder 1, %s16
      %p179 = scmp.lt.s32.totalorder %s16, 3
      %p180 = pnand %p178, %p179
      %p181 = pneg %p180
      // Predicated region
      $region29: #{tpu_custom_call.1} parent=5 // pred_check
        _
      $region30: #{tpu_custom_call.1} parent=5 // pred_check_branch
        %183 = sbr.rel (%p180) target = $region32
      $region31: #{tpu_custom_call.1} parent=5 // pred_region
        %s184 = ssub.s32 %s16, 1
        %s185 = sand.u32 %s76, 1
        %s186 = scalar_lea.sflag [#allocation4], %s185
        %s187 = sand.u32 %s76, 1
        %s188 = smul.addr %s187, 16
        %s189 = scalar_lea.vmem [#allocation3], %s188
        // Predicated region
        $region33: #{tpu_custom_call.1} parent=31 // pred_check
          %p190 = pneg %p89
        $region34: #{tpu_custom_call.1} parent=31 // pred_check_branch
          %192 = sbr.rel (%p190) target = $region36
        $region35: #{tpu_custom_call.1} parent=31 // pred_region
          %193 = dma.done %s186, 256
        $region36: #{tpu_custom_call.1} parent=31 // pred_fallthru
          _
        %p194 = pneg %p37
        %p195 = pneg %p34
        %s196 = smul.u32 2, %s21
        %s197 = ssub.s32 3, %s196
        %p198 = scmp.lt.s32.totalorder %s197, 2
        %s199 = scalar_select %p198, %s197, 2
        %s200 = smul.u32 16, %s199
        %p201 = scmp.lt.s32.totalorder %s196, 2
        %s202 = scalar_select %p201, %s196, 2
        %s203 = scalar_lea.vmem %s1, %s202
        %p204 = pneg %p63
        %p205 = pneg %p60
        %s206 = sand.u32 %s76, 1
        %s207 = scalar_lea.sflag [#allocation4], %s206
        %s208 = sand.u32 %s76, 1
        %s209 = smul.addr %s208, 16
        %s210 = scalar_lea.vmem [#allocation3], %s209
        %p211 = pneg %p89
        %p212 = pneg %p86
        %p213 = pneg %p115
        %p214 = pneg %p112
        %s215 = sand.u32 %s102, 1
        %s216 = scalar_lea.sflag [#allocation5], %s215
        %s217 = sand.u32 %s102, 1
        %s218 = smul.addr %s217, 16
        %s219 = scalar_lea.vmem [#allocation6], %s218
        %s220 = smul.u32 2, %s21
        %s221 = ssub.s32 3, %s220
        %p222 = scmp.lt.s32.totalorder %s221, 2
        %s223 = scalar_select %p222, %s221, 2
        %s224 = smul.u32 16, %s223
        %p225 = scmp.lt.s32.totalorder %s220, 2
        %s226 = scalar_select %p225, %s220, 2
        %s227 = scalar_lea.vmem %s1, %s226
        %s228 = smul.u32 2, %s21
        %s229 = ssub.s32 3, %s228
        %p230 = scmp.lt.s32.totalorder %s229, 2
        %s231 = scalar_select %p230, %s229, 2
        %s232 = smul.u32 16, %s231
        %s233 = smul.u32 2, %s21
        %s234 = ssub.s32 3, %s233
        %p235 = scmp.lt.s32.totalorder %s234, 2
        %s236 = scalar_select %p235, %s234, 2
        %s237 = smul.u32 128, %s236
        %s238 = smul.u32 2, %s21
        %s239 = ssub.s32 3, %s238
        %p240 = scmp.lt.s32.totalorder %s239, 2
        %s241 = scalar_select %p240, %s239, 2
        %s242 = smul.u32 128, %s241
        %v243 = vld [vmem:[%s227] sm:$0x3]
        %v244 = vld [vmem:[%s189] sm:$0xff]
        %v245 = vld [vmem:[%s189 + $0x8] sm:$0xff]
        %s246 = sld [smem:[#allocation2]]
        %v247 = vstv %s246
        %v248 = vmul.f32 %v244, %v247
        %v249 = vmul.f32 %v245, %v247
        %v251 = vlaneseq
        %v252 = vshrl.u32 %v251, 7
        %v253 = vsub.s32 0, %v252
        %v254 = vrot.slane %v243, %v253
        %v255 = vlaneseq
        %v256 = vshrl.u32 %v255, 7
        %v257 = vsub.s32 1, %v256
        %v258 = vrot.slane %v243, %v257
        %v261 = vadd.f32 %v254, %v248
        %v262 = vadd.f32 %v258, %v249
        %263 = vst [vmem:[%s219] sm:$0xff] %v261
        %264 = vst [vmem:[%s219 + $0x8] sm:$0xff] %v262
        %s265 = sand.u32 %s102, 1
        %s266 = scalar_lea.sflag [#allocation5], %s265
        %s267 = sand.u32 %s102, 1
        %s268 = smul.addr %s267, 16
        %s269 = scalar_lea.vmem [#allocation6], %s268
        // Predicated region
        $region37: #{tpu_custom_call.1} parent=31 // pred_check
          %p270 = pneg %p112
        $region38: #{tpu_custom_call.1} parent=31 // pred_check_branch
          %272 = sbr.rel (%p270) target = $region40
        $region39: #{tpu_custom_call.1} parent=31 // pred_region
          %s273 = smul.u32 2, %s21
          %s274 = ssub.s32 3, %s273
          %p275 = scmp.lt.s32.totalorder %s274, 2
          %s276 = scalar_select %p275, %s274, 2
          %s277 = smul.u32 128, %s276
          %s279 = ssub.s32 256, %s277
          %280 = vsyncadd %s266, %s279
          %p281 = scmp.ne.s32.totalorder 0, %s277
          %s282 = smul.addr %s273, 128
          %s283 = scalar_lea.hbm %s3, %s282
          %s284 = smul.u32 %s276, 8
          %s285 = sshll.u32 %s284, 4
          %s286 = sshll.u32 %s269, 4
          %s287 = int_to_ptr.vmem [resolvable:$true] %s286
          %289 = dma.vmem_to_hbm [thread:$0]  (%p281), %s287, %s285, %s283, %s266
        $region40: #{tpu_custom_call.1} parent=31 // pred_fallthru
          _
      $region32: #{tpu_custom_call.1} parent=5 // pred_fallthru
        _
      %p290 = scmp.le.s32.totalorder 2, %s16
      // Predicated region
      $region41: #{tpu_custom_call.1} parent=5 // pred_check
        %p291 = pneg %p290
      $region42: #{tpu_custom_call.1} parent=5 // pred_check_branch
        %293 = sbr.rel (%p291) target = $region44
      $region43: #{tpu_custom_call.1} parent=5 // pred_region
        %s294 = ssub.s32 %s16, 2
        // Predicated region
        $region45: #{tpu_custom_call.1} parent=43 // pred_check
          %p295 = pneg %p118
        $region46: #{tpu_custom_call.1} parent=43 // pred_check_branch
          %297 = sbr.rel (%p295) target = $region48
        $region47: #{tpu_custom_call.1} parent=43 // pred_region
          %s298 = sand.u32 %s103, 1
          %s299 = scalar_lea.sflag [#allocation5], %s298
          %s300 = sand.u32 %s103, 1
          %s301 = smul.addr %s300, 16
          %s302 = scalar_lea.vmem [#allocation6], %s301
          %303 = dma.done %s299, 256
        $region48: #{tpu_custom_call.1} parent=43 // pred_fallthru
          _
      $region44: #{tpu_custom_call.1} parent=5 // pred_fallthru
        _
    $region6: #{tpu_custom_call.1} parent=1 // loop_footer
      %s20 = sadd.s32 1, %s16
    $region7: #{tpu_custom_call.1} parent=1 // loop_footer_branch
      %15 = sbr.rel target = $region3
    $region8: #{tpu_custom_call.1} parent=1 // loop_exit
      _
    %304 = vsyncpa [#allocation4], 1
    %s305 = scalar_lea.sflag [#allocation4], 1
    %306 = vsyncpa %s305, 1
    %307 = vsyncpa [#allocation5], 1
    %s308 = scalar_lea.sflag [#allocation5], 1
    %309 = vsyncpa %s308, 1

</llo_original>
